<compile_context>
chip_gen: v7x
topology: tpu7x:2x2x1
jax: 0.10.0
libtpu: 0.0.40
codegen_flags: <defaults>
</compile_context>

<pallas_src>
import numpy as np
import jax
import jax.numpy as jnp
from jax.experimental import pallas as pl
from jax.experimental.pallas import tpu as pltpu

# torchvision rgb_to_grayscale weights
_GW_R, _GW_G, _GW_B = 0.2989, 0.587, 0.114

_ROW_TILE_CAP = 1024                 # sweep 512..2048; 1024 keeps temps well inside VMEM
_VMEM_LIMIT = 32 * 1024 * 1024       # safe on v5e/v6e/v7x, above v5e's 16 MiB default


def _round_up(x, m):
    return ((x + m - 1) // m) * m


def _frac(x):
    # mod-1 that lowers to floor+sub (no f32 remainder); shared by kernel & reference.
    return x - jnp.floor(x)


# ----------------------------- color helpers (shared by kernel and jnp reference)

def _rgb2hsv(r, g, b):
    # torchvision _rgb_to_hsv, with the 4 divides collapsed to 2 reciprocals + muls.
    maxc = jnp.maximum(jnp.maximum(r, g), b)
    minc = jnp.minimum(jnp.minimum(r, g), b)
    eqc = maxc == minc
    cr = maxc - minc
    ones = jnp.ones_like(maxc)
    s = cr * (1.0 / jnp.where(eqc, ones, maxc))
    inv_cr = 1.0 / jnp.where(eqc, ones, cr)
    rc = (maxc - r) * inv_cr
    gc = (maxc - g) * inv_cr
    bc = (maxc - b) * inv_cr
    hr = (maxc == r).astype(r.dtype) * (bc - gc)
    hg = ((maxc == g) & (maxc != r)).astype(r.dtype) * (2.0 + rc - bc)
    hb = ((maxc != g) & (maxc != r)).astype(r.dtype) * (4.0 + gc - rc)
    h = _frac((hr + hg + hb) / 6.0 + 1.0)
    return h, s, maxc


def _hsv2rgb(h, s, v):
    # torchvision _hsv_to_rgb (no clipping); float sector masks, hoisted and shared.
    h6 = h * 6.0
    i = jnp.floor(h6)
    f = h6 - i
    one_m_s = 1.0 - s
    sxf = s * f
    p = one_m_s * v
    q = (1.0 - sxf) * v
    t = (sxf + one_m_s) * v
    m1, m2, m3, m4, m5 = (i == 1.0), (i == 2.0), (i == 3.0), (i == 4.0), (i == 5.0)

    def sel(a0, a1, a2, a3, a4, a5):
        out = a0
        out = jnp.where(m1, a1, out)
        out = jnp.where(m2, a2, out)
        out = jnp.where(m3, a3, out)
        out = jnp.where(m4, a4, out)
        out = jnp.where(m5, a5, out)
        return out

    return sel(v, q, p, p, t, v), sel(t, v, v, q, p, p), sel(p, p, t, v, v, q)


def _gray_nchw(x):
    # (N, 3, H, W) -> (N, 1, H, W)
    return _GW_R * x[:, 0:1] + _GW_G * x[:, 1:2] + _GW_B * x[:, 2:3]


def _apply_op_jnp(x, op, enabled, bf, cf, sf, hf):
    """One ColorJitter op on an NCHW float image (pure jnp, wrapper / reference)."""
    if op == 0 and enabled[0]:                       # brightness
        return jnp.clip(x * bf, 0.0, 1.0)
    if op == 1 and enabled[1]:                       # contrast
        mean = jnp.mean(_gray_nchw(x), axis=(1, 2, 3), keepdims=True)
        return jnp.clip(cf * x + (1.0 - cf) * mean, 0.0, 1.0)
    if op == 2 and enabled[2]:                       # saturation
        return jnp.clip(sf * x + (1.0 - sf) * _gray_nchw(x), 0.0, 1.0)
    if op == 3 and enabled[3]:                       # hue
        h, s, v = _rgb2hsv(x[:, 0], x[:, 1], x[:, 2])
        h = _frac(h + hf)
        r, g, b = _hsv2rgb(h, s, v)
        return jnp.stack([r, g, b], axis=1)
    return x


# ----------------------------- Pallas kernel

def _make_color_jitter_kernel(order, enabled):
    """Kernel closure over the (static) op order and which ops are enabled.

    order   : tuple of op ids (0=brightness, 1=contrast, 2=saturation, 3=hue)
    enabled : tuple of 4 bools (config thresholds > 0)
    Runtime per-image scalars arrive as a lane-replicated (1, 8, 128) VMEM block.
    """
    apply_b, apply_c, apply_s, apply_h = enabled

    def kernel(scal_ref, img_ref, out_ref):
        prm = scal_ref[0]                     # (8, 128) f32, lane-replicated scalars
        bf = prm[0:1, :]                      # brightness factor
        cf = prm[1:2, :]                      # contrast factor
        sf = prm[2:3, :]                      # saturation factor
        hf = prm[3:4, :]                      # hue shift
        c_off = prm[4:5, :]                   # (1 - cf) * per-image order-aware mean

        # Dense (TS, 128) channel tiles.
        r = img_ref[0, 0].astype(jnp.float32)
        g = img_ref[0, 1].astype(jnp.float32)
        b = img_ref[0, 2].astype(jnp.float32)

        for op in order:
            if op == 0 and apply_b:                          # brightness
                r = jnp.clip(r * bf, 0.0, 1.0)
                g = jnp.clip(g * bf, 0.0, 1.0)
                b = jnp.clip(b * bf, 0.0, 1.0)
            elif op == 1 and apply_c:                        # contrast
                r = jnp.clip(cf * r + c_off, 0.0, 1.0)
                g = jnp.clip(cf * g + c_off, 0.0, 1.0)
                b = jnp.clip(cf * b + c_off, 0.0, 1.0)
            elif op == 2 and apply_s:                        # saturation
                gray = _GW_R * r + _GW_G * g + _GW_B * b
                one_m_sf = 1.0 - sf
                r = jnp.clip(sf * r + one_m_sf * gray, 0.0, 1.0)
                g = jnp.clip(sf * g + one_m_sf * gray, 0.0, 1.0)
                b = jnp.clip(sf * b + one_m_sf * gray, 0.0, 1.0)
            elif op == 3 and apply_h:                        # hue
                h, s, v = _rgb2hsv(r, g, b)
                h = _frac(h + hf)
                r, g, b = _hsv2rgb(h, s, v)

        # Three direct dense channel stores (no stacked temporary).
        out_ref[0, 0] = r.astype(out_ref.dtype)
        out_ref[0, 1] = g.astype(out_ref.dtype)
        out_ref[0, 2] = b.astype(out_ref.dtype)

    return kernel


# ----------------------------- parameter sampling (mirrors ColorJitter.get_params)

def _sample_params(seed, brightness, contrast, saturation, hue):
    # TODO(synk): distributionally equivalent to torchvision's ColorJitter.get_params
    # but does not bit-match torch's RNG stream.
    order = tuple(int(i) for i in np.random.default_rng(int(seed)).permutation(4))
    enabled = (brightness > 0, contrast > 0, saturation > 0, hue > 0)
    k_b, k_c, k_s, k_h = jax.random.split(jax.random.PRNGKey(seed), 4)
    one, zero = jnp.float32(1.0), jnp.float32(0.0)
    bf = (jax.random.uniform(k_b, (), jnp.float32,
                             max(0.0, 1.0 - brightness), 1.0 + brightness)
          if enabled[0] else one)
    cf = (jax.random.uniform(k_c, (), jnp.float32,
                             max(0.0, 1.0 - contrast), 1.0 + contrast)
          if enabled[1] else one)
    sf = (jax.random.uniform(k_s, (), jnp.float32,
                             max(0.0, 1.0 - saturation), 1.0 + saturation)
          if enabled[2] else one)
    hf = (jax.random.uniform(k_h, (), jnp.float32, -hue, hue)
          if enabled[3] else zero)
    return order, enabled, bf, cf, sf, hf


# ----------------------------- forward

def color_jitter_forward(image, label, *, brightness=0.4, contrast=0.4,
                         saturation=0.4, hue=0.1, seed=0):
    """Pallas equivalent of ColorJitter(...).forward(image, label).

    image : float (N, 3, H, W) with values in [0, 1];  label passed through.
    """
    order, enabled, bf, cf, sf, hf = _sample_params(
        seed, brightness, contrast, saturation, hue)

    N, C, H, W = image.shape
    assert C == 3, "ColorJitter expects RGB (C=3) images"
    HW = H * W

    # Order-aware per-image grayscale mean for the contrast op (whole-image reduction
    # hoisted out of the tiled kernel; XLA fuses the prefix ops with the reduction).
    if enabled[1]:
        state = image.astype(jnp.float32)
        for op in order:
            if op == 1:
                break
            state = _apply_op_jnp(state, op, enabled, bf, cf, sf, hf)
        means = jnp.mean(_gray_nchw(state), axis=(1, 2, 3))
    else:
        means = jnp.zeros((N,), jnp.float32)
    c_off = ((1.0 - cf) * means).astype(jnp.float32)

    # Runtime scalars, lane-replicated so the kernel uses them as (1, 128) rows.
    vals = jnp.stack([
        jnp.full((N,), bf, jnp.float32),
        jnp.full((N,), cf, jnp.float32),
        jnp.full((N,), sf, jnp.float32),
        jnp.full((N,), hf, jnp.float32),
        c_off,
        jnp.zeros((N,), jnp.float32),
        jnp.zeros((N,), jnp.float32),
        jnp.zeros((N,), jnp.float32)], axis=1)                      # (N, 8)
    scal = jnp.broadcast_to(vals[:, :, None], (N, 8, 128)).astype(jnp.float32)

    # Lane/sublane-dense layout: (N, 3, R, 128). Reshape is free when HW % 128 == 0.
    R = pl.cdiv(HW, 128)
    pad = R * 128 - HW
    img_flat = image.reshape(N, C, HW)
    if pad:
        # TODO(synk): non-multiple-of-128 H*W pays one pad copy + one slice copy.
        img_flat = jnp.pad(img_flat, ((0, 0), (0, 0), (0, pad)))
    img_tiled = img_flat.reshape(N, C, R, 128)

    # Row-tile selection: full-R block for small images (no padding / raggedness),
    # capped tiles with a pl.cdiv grid (ragged last block) for large ones.
    if R <= _ROW_TILE_CAP:
        TS = R
        if N == 1 and R >= 16:        # keep >= 2 parallel grid points for 2-TC chips
            TS = _round_up(pl.cdiv(R, 2), 8)
    else:
        TS = _ROW_TILE_CAP
    grid_t = pl.cdiv(R, TS)
    # TODO(synk): for bf16 inputs round TS to multiples of 16 (native sublane packing).

    kernel = _make_color_jitter_kernel(order, enabled)

    out_tiled = pl.pallas_call(
        kernel,
        out_shape=jax.ShapeDtypeStruct((N, C, R, 128), image.dtype),
        grid=(N, grid_t),
        in_specs=[pl.BlockSpec((1, 8, 128), lambda n, t: (n, 0, 0)),
                  pl.BlockSpec((1, C, TS, 128), lambda n, t: (n, 0, t, 0))],
        out_specs=pl.BlockSpec((1, C, TS, 128), lambda n, t: (n, 0, t, 0)),
        compiler_params=pltpu.CompilerParams(
            dimension_semantics=("parallel", "parallel"),
            vmem_limit_bytes=_VMEM_LIMIT),
        # input_output_aliases={1: 0} would reuse the input HBM buffer when the caller
        # no longer needs `image`; left off so `image` stays valid for the check below.
    )(scal, img_tiled)

    out_flat = out_tiled.reshape(N, C, R * 128)
    if pad:
        out_flat = out_flat[:, :, :HW]
    return out_flat.reshape(N, C, H, W), label


# ----------------------------- pure-jnp reference (same sampled parameters)

def _reference_color_jitter(image, order, enabled, bf, cf, sf, hf):
    x = image.astype(jnp.float32)
    for op in order:
        x = _apply_op_jnp(x, op, enabled, bf, cf, sf, hf)
    return x.astype(image.dtype)


if __name__ == "__main__":
    root = jax.random.PRNGKey(0)
    k_img, k_lbl = jax.random.split(root)

    N, C, H, W = 2, 3, 16, 16
    image = jax.random.uniform(k_img, (N, C, H, W), dtype=jnp.float32)  # [0, 1]
    label = jax.random.randint(k_lbl, (N,), 0, 10, dtype=jnp.int32)

    seed = 0
    out_img, out_lbl = color_jitter_forward(
        image, label, brightness=0.4, contrast=0.4, saturation=0.4, hue=0.1,
        seed=seed)

    jax.block_until_ready(out_img)
    jax.block_until_ready(out_lbl)

    assert out_img.shape == image.shape and out_img.dtype == image.dtype
    assert out_lbl.shape == label.shape and out_lbl.dtype == label.dtype
    assert bool(jnp.all(out_img >= -1e-6)) and bool(jnp.all(out_img <= 1.0 + 1e-6))
    assert bool(jnp.all(out_lbl == label))

    # Verify against a pure-jnp reference using the exact same sampled parameters.
    order, enabled, bf, cf, sf, hf = _sample_params(seed, 0.4, 0.4, 0.4, 0.1)
    ref = _reference_color_jitter(image, order, enabled, bf, cf, sf, hf)
    err = float(jnp.max(jnp.abs(out_img.astype(jnp.float32) - ref.astype(jnp.float32))))
    assert err <= 2e-3, f"mismatch vs jnp reference (max abs err {err})"

    print("KERNEL_OK")
</pallas_src>

<mosaic_0001>
module attributes {stable_mosaic.version = 11 : i64} {
  func.func @kernel(%arg0: i32, %arg1: i32, %arg2: memref<1x8x128xf32, #tpu.memory_space<vmem>>, %arg3: memref<1x3x2x128xf32, #tpu.memory_space<vmem>>, %arg4: memref<1x3x2x128xf32, #tpu.memory_space<vmem>>) attributes {dimension_semantics = [#tpu.dimension_semantics<parallel>, #tpu.dimension_semantics<parallel>], iteration_bounds = array<i64: 2, 1>, scalar_prefetch = 0 : i64, scratch_operands = 0 : i64, tpu.core_type = #tpu.core_type<tc>, window_params = [{transform_indices = @transform_0, window_bounds = array<i64: 1, 8, 128>}, {transform_indices = @transform_1, window_bounds = array<i64: 1, 3, 2, 128>}, {transform_indices = @transform_2, window_bounds = array<i64: 1, 3, 2, 128>}]} {
    %c0 = arith.constant 0 : index
    %c0_0 = arith.constant 0 : index
    %c0_1 = arith.constant 0 : index
    %0 = vector.load %arg2[%c0, %c0_0, %c0_1] : memref<1x8x128xf32, #tpu.memory_space<vmem>>, vector<1x8x128xf32>
    %1 = vector.shape_cast %0 : vector<1x8x128xf32> to vector<8x128xf32>
    %2 = vector.extract_strided_slice %1 {offsets = [0, 0], sizes = [1, 128], strides = [1, 1]} : vector<8x128xf32> to vector<1x128xf32>
    %3 = vector.extract_strided_slice %1 {offsets = [1, 0], sizes = [1, 128], strides = [1, 1]} : vector<8x128xf32> to vector<1x128xf32>
    %4 = vector.extract_strided_slice %1 {offsets = [2, 0], sizes = [1, 128], strides = [1, 1]} : vector<8x128xf32> to vector<1x128xf32>
    %5 = vector.extract_strided_slice %1 {offsets = [3, 0], sizes = [1, 128], strides = [1, 1]} : vector<8x128xf32> to vector<1x128xf32>
    %6 = vector.extract_strided_slice %1 {offsets = [4, 0], sizes = [1, 128], strides = [1, 1]} : vector<8x128xf32> to vector<1x128xf32>
    %c0_2 = arith.constant 0 : index
    %c0_3 = arith.constant 0 : index
    %c0_4 = arith.constant 0 : index
    %c0_5 = arith.constant 0 : index
    %7 = vector.load %arg3[%c0_2, %c0_3, %c0_4, %c0_5] : memref<1x3x2x128xf32, #tpu.memory_space<vmem>>, vector<1x1x2x128xf32>
    %8 = vector.shape_cast %7 : vector<1x1x2x128xf32> to vector<2x128xf32>
    %c0_6 = arith.constant 0 : index
    %c1 = arith.constant 1 : index
    %c0_7 = arith.constant 0 : index
    %c0_8 = arith.constant 0 : index
    %9 = vector.load %arg3[%c0_6, %c1, %c0_7, %c0_8] : memref<1x3x2x128xf32, #tpu.memory_space<vmem>>, vector<1x1x2x128xf32>
    %10 = vector.shape_cast %9 : vector<1x1x2x128xf32> to vector<2x128xf32>
    %c0_9 = arith.constant 0 : index
    %c2 = arith.constant 2 : index
    %c0_10 = arith.constant 0 : index
    %c0_11 = arith.constant 0 : index
    %11 = vector.load %arg3[%c0_9, %c2, %c0_10, %c0_11] : memref<1x3x2x128xf32, #tpu.memory_space<vmem>>, vector<1x1x2x128xf32>
    %12 = vector.shape_cast %11 : vector<1x1x2x128xf32> to vector<2x128xf32>
    %cst = arith.constant 2.989000e-01 : f32
    %13 = vector.broadcast %cst : f32 to vector<2x128xf32>
    %14 = arith.mulf %13, %8 : vector<2x128xf32>
    %cst_12 = arith.constant 5.870000e-01 : f32
    %15 = vector.broadcast %cst_12 : f32 to vector<2x128xf32>
    %16 = arith.mulf %15, %10 : vector<2x128xf32>
    %17 = arith.addf %14, %16 : vector<2x128xf32>
    %cst_13 = arith.constant 1.140000e-01 : f32
    %18 = vector.broadcast %cst_13 : f32 to vector<2x128xf32>
    %19 = arith.mulf %18, %12 : vector<2x128xf32>
    %20 = arith.addf %17, %19 : vector<2x128xf32>
    %cst_14 = arith.constant 1.000000e+00 : f32
    %21 = vector.broadcast %cst_14 : f32 to vector<1x128xf32>
    %22 = arith.subf %21, %4 : vector<1x128xf32>
    %23 = vector.broadcast %4 : vector<1x128xf32> to vector<2x128xf32>
    %24 = arith.mulf %23, %8 : vector<2x128xf32>
    %25 = vector.broadcast %22 : vector<1x128xf32> to vector<2x128xf32>
    %26 = arith.mulf %25, %20 : vector<2x128xf32>
    %27 = arith.addf %24, %26 : vector<2x128xf32>
    %cst_15 = arith.constant 0.000000e+00 : f32
    %cst_16 = arith.constant 1.000000e+00 : f32
    %28 = vector.broadcast %cst_15 : f32 to vector<2x128xf32>
    %29 = arith.maximumf %28, %27 : vector<2x128xf32>
    %30 = vector.broadcast %cst_16 : f32 to vector<2x128xf32>
    %31 = arith.minimumf %30, %29 : vector<2x128xf32>
    %32 = vector.broadcast %4 : vector<1x128xf32> to vector<2x128xf32>
    %33 = arith.mulf %32, %10 : vector<2x128xf32>
    %34 = vector.broadcast %22 : vector<1x128xf32> to vector<2x128xf32>
    %35 = arith.mulf %34, %20 : vector<2x128xf32>
    %36 = arith.addf %33, %35 : vector<2x128xf32>
    %cst_17 = arith.constant 0.000000e+00 : f32
    %cst_18 = arith.constant 1.000000e+00 : f32
    %37 = vector.broadcast %cst_17 : f32 to vector<2x128xf32>
    %38 = arith.maximumf %37, %36 : vector<2x128xf32>
    %39 = vector.broadcast %cst_18 : f32 to vector<2x128xf32>
    %40 = arith.minimumf %39, %38 : vector<2x128xf32>
    %41 = vector.broadcast %4 : vector<1x128xf32> to vector<2x128xf32>
    %42 = arith.mulf %41, %12 : vector<2x128xf32>
    %43 = vector.broadcast %22 : vector<1x128xf32> to vector<2x128xf32>
    %44 = arith.mulf %43, %20 : vector<2x128xf32>
    %45 = arith.addf %42, %44 : vector<2x128xf32>
    %cst_19 = arith.constant 0.000000e+00 : f32
    %cst_20 = arith.constant 1.000000e+00 : f32
    %46 = vector.broadcast %cst_19 : f32 to vector<2x128xf32>
    %47 = arith.maximumf %46, %45 : vector<2x128xf32>
    %48 = vector.broadcast %cst_20 : f32 to vector<2x128xf32>
    %49 = arith.minimumf %48, %47 : vector<2x128xf32>
    %50 = vector.broadcast %2 : vector<1x128xf32> to vector<2x128xf32>
    %51 = arith.mulf %31, %50 : vector<2x128xf32>
    %cst_21 = arith.constant 0.000000e+00 : f32
    %cst_22 = arith.constant 1.000000e+00 : f32
    %52 = vector.broadcast %cst_21 : f32 to vector<2x128xf32>
    %53 = arith.maximumf %52, %51 : vector<2x128xf32>
    %54 = vector.broadcast %cst_22 : f32 to vector<2x128xf32>
    %55 = arith.minimumf %54, %53 : vector<2x128xf32>
    %56 = vector.broadcast %2 : vector<1x128xf32> to vector<2x128xf32>
    %57 = arith.mulf %40, %56 : vector<2x128xf32>
    %cst_23 = arith.constant 0.000000e+00 : f32
    %cst_24 = arith.constant 1.000000e+00 : f32
    %58 = vector.broadcast %cst_23 : f32 to vector<2x128xf32>
    %59 = arith.maximumf %58, %57 : vector<2x128xf32>
    %60 = vector.broadcast %cst_24 : f32 to vector<2x128xf32>
    %61 = arith.minimumf %60, %59 : vector<2x128xf32>
    %62 = vector.broadcast %2 : vector<1x128xf32> to vector<2x128xf32>
    %63 = arith.mulf %49, %62 : vector<2x128xf32>
    %cst_25 = arith.constant 0.000000e+00 : f32
    %cst_26 = arith.constant 1.000000e+00 : f32
    %64 = vector.broadcast %cst_25 : f32 to vector<2x128xf32>
    %65 = arith.maximumf %64, %63 : vector<2x128xf32>
    %66 = vector.broadcast %cst_26 : f32 to vector<2x128xf32>
    %67 = arith.minimumf %66, %65 : vector<2x128xf32>
    %68 = vector.broadcast %3 : vector<1x128xf32> to vector<2x128xf32>
    %69 = arith.mulf %68, %55 : vector<2x128xf32>
    %70 = vector.broadcast %6 : vector<1x128xf32> to vector<2x128xf32>
    %71 = arith.addf %69, %70 : vector<2x128xf32>
    %cst_27 = arith.constant 0.000000e+00 : f32
    %cst_28 = arith.constant 1.000000e+00 : f32
    %72 = vector.broadcast %cst_27 : f32 to vector<2x128xf32>
    %73 = arith.maximumf %72, %71 : vector<2x128xf32>
    %74 = vector.broadcast %cst_28 : f32 to vector<2x128xf32>
    %75 = arith.minimumf %74, %73 : vector<2x128xf32>
    %76 = vector.broadcast %3 : vector<1x128xf32> to vector<2x128xf32>
    %77 = arith.mulf %76, %61 : vector<2x128xf32>
    %78 = vector.broadcast %6 : vector<1x128xf32> to vector<2x128xf32>
    %79 = arith.addf %77, %78 : vector<2x128xf32>
    %cst_29 = arith.constant 0.000000e+00 : f32
    %cst_30 = arith.constant 1.000000e+00 : f32
    %80 = vector.broadcast %cst_29 : f32 to vector<2x128xf32>
    %81 = arith.maximumf %80, %79 : vector<2x128xf32>
    %82 = vector.broadcast %cst_30 : f32 to vector<2x128xf32>
    %83 = arith.minimumf %82, %81 : vector<2x128xf32>
    %84 = vector.broadcast %3 : vector<1x128xf32> to vector<2x128xf32>
    %85 = arith.mulf %84, %67 : vector<2x128xf32>
    %86 = vector.broadcast %6 : vector<1x128xf32> to vector<2x128xf32>
    %87 = arith.addf %85, %86 : vector<2x128xf32>
    %cst_31 = arith.constant 0.000000e+00 : f32
    %cst_32 = arith.constant 1.000000e+00 : f32
    %88 = vector.broadcast %cst_31 : f32 to vector<2x128xf32>
    %89 = arith.maximumf %88, %87 : vector<2x128xf32>
    %90 = vector.broadcast %cst_32 : f32 to vector<2x128xf32>
    %91 = arith.minimumf %90, %89 : vector<2x128xf32>
    %92 = arith.maximumf %75, %83 : vector<2x128xf32>
    %93 = arith.maximumf %92, %91 : vector<2x128xf32>
    %94 = arith.minimumf %75, %83 : vector<2x128xf32>
    %95 = arith.minimumf %94, %91 : vector<2x128xf32>
    %96 = arith.cmpf oeq, %93, %95 : vector<2x128xf32>
    %97 = arith.subf %93, %95 : vector<2x128xf32>
    %cst_33 = arith.constant 1.000000e+00 : f32
    %98 = vector.broadcast %cst_33 : f32 to vector<2x128xf32>
    %99 = arith.select %96, %98, %93 : vector<2x128xi1>, vector<2x128xf32>
    %cst_34 = arith.constant 1.000000e+00 : f32
    %100 = vector.broadcast %cst_34 : f32 to vector<2x128xf32>
    %101 = arith.divf %100, %99 : vector<2x128xf32>
    %102 = arith.mulf %97, %101 : vector<2x128xf32>
    %103 = arith.select %96, %98, %97 : vector<2x128xi1>, vector<2x128xf32>
    %cst_35 = arith.constant 1.000000e+00 : f32
    %104 = vector.broadcast %cst_35 : f32 to vector<2x128xf32>
    %105 = arith.divf %104, %103 : vector<2x128xf32>
    %106 = arith.subf %93, %75 : vector<2x128xf32>
    %107 = arith.mulf %106, %105 : vector<2x128xf32>
    %108 = arith.subf %93, %83 : vector<2x128xf32>
    %109 = arith.mulf %108, %105 : vector<2x128xf32>
    %110 = arith.subf %93, %91 : vector<2x128xf32>
    %111 = arith.mulf %110, %105 : vector<2x128xf32>
    %112 = arith.cmpf oeq, %93, %75 : vector<2x128xf32>
    %113 = arith.extui %112 : vector<2x128xi1> to vector<2x128xi32>
    %114 = arith.sitofp %113 : vector<2x128xi32> to vector<2x128xf32>
    %115 = arith.subf %111, %109 : vector<2x128xf32>
    %116 = arith.mulf %114, %115 : vector<2x128xf32>
    %117 = arith.cmpf oeq, %93, %83 : vector<2x128xf32>
    %118 = arith.cmpf one, %93, %75 : vector<2x128xf32>
    %119 = arith.andi %117, %118 : vector<2x128xi1>
    %120 = arith.extui %119 : vector<2x128xi1> to vector<2x128xi32>
    %121 = arith.sitofp %120 : vector<2x128xi32> to vector<2x128xf32>
    %cst_36 = arith.constant 2.000000e+00 : f32
    %122 = vector.broadcast %cst_36 : f32 to vector<2x128xf32>
    %123 = arith.addf %122, %107 : vector<2x128xf32>
    %124 = arith.subf %123, %111 : vector<2x128xf32>
    %125 = arith.mulf %121, %124 : vector<2x128xf32>
    %126 = arith.cmpf one, %93, %83 : vector<2x128xf32>
    %127 = arith.cmpf one, %93, %75 : vector<2x128xf32>
    %128 = arith.andi %126, %127 : vector<2x128xi1>
    %129 = arith.extui %128 : vector<2x128xi1> to vector<2x128xi32>
    %130 = arith.sitofp %129 : vector<2x128xi32> to vector<2x128xf32>
    %cst_37 = arith.constant 4.000000e+00 : f32
    %131 = vector.broadcast %cst_37 : f32 to vector<2x128xf32>
    %132 = arith.addf %131, %109 : vector<2x128xf32>
    %133 = arith.subf %132, %107 : vector<2x128xf32>
    %134 = arith.mulf %130, %133 : vector<2x128xf32>
    %135 = arith.addf %116, %125 : vector<2x128xf32>
    %136 = arith.addf %135, %134 : vector<2x128xf32>
    %cst_38 = arith.constant 6.000000e+00 : f32
    %137 = vector.broadcast %cst_38 : f32 to vector<2x128xf32>
    %138 = arith.divf %136, %137 : vector<2x128xf32>
    %cst_39 = arith.constant 1.000000e+00 : f32
    %139 = vector.broadcast %cst_39 : f32 to vector<2x128xf32>
    %140 = arith.addf %138, %139 : vector<2x128xf32>
    %141 = math.floor %140 : vector<2x128xf32>
    %142 = arith.subf %140, %141 : vector<2x128xf32>
    %143 = vector.broadcast %5 : vector<1x128xf32> to vector<2x128xf32>
    %144 = arith.addf %142, %143 : vector<2x128xf32>
    %145 = math.floor %144 : vector<2x128xf32>
    %146 = arith.subf %144, %145 : vector<2x128xf32>
    %cst_40 = arith.constant 6.000000e+00 : f32
    %147 = vector.broadcast %cst_40 : f32 to vector<2x128xf32>
    %148 = arith.mulf %146, %147 : vector<2x128xf32>
    %149 = math.floor %148 : vector<2x128xf32>
    %150 = arith.subf %148, %149 : vector<2x128xf32>
    %cst_41 = arith.constant 1.000000e+00 : f32
    %151 = vector.broadcast %cst_41 : f32 to vector<2x128xf32>
    %152 = arith.subf %151, %102 : vector<2x128xf32>
    %153 = arith.mulf %102, %150 : vector<2x128xf32>
    %154 = arith.mulf %152, %93 : vector<2x128xf32>
    %cst_42 = arith.constant 1.000000e+00 : f32
    %155 = vector.broadcast %cst_42 : f32 to vector<2x128xf32>
    %156 = arith.subf %155, %153 : vector<2x128xf32>
    %157 = arith.mulf %156, %93 : vector<2x128xf32>
    %158 = arith.addf %153, %152 : vector<2x128xf32>
    %159 = arith.mulf %158, %93 : vector<2x128xf32>
    %cst_43 = arith.constant 1.000000e+00 : f32
    %160 = vector.broadcast %cst_43 : f32 to vector<2x128xf32>
    %161 = arith.cmpf oeq, %149, %160 : vector<2x128xf32>
    %cst_44 = arith.constant 2.000000e+00 : f32
    %162 = vector.broadcast %cst_44 : f32 to vector<2x128xf32>
    %163 = arith.cmpf oeq, %149, %162 : vector<2x128xf32>
    %cst_45 = arith.constant 3.000000e+00 : f32
    %164 = vector.broadcast %cst_45 : f32 to vector<2x128xf32>
    %165 = arith.cmpf oeq, %149, %164 : vector<2x128xf32>
    %cst_46 = arith.constant 4.000000e+00 : f32
    %166 = vector.broadcast %cst_46 : f32 to vector<2x128xf32>
    %167 = arith.cmpf oeq, %149, %166 : vector<2x128xf32>
    %cst_47 = arith.constant 5.000000e+00 : f32
    %168 = vector.broadcast %cst_47 : f32 to vector<2x128xf32>
    %169 = arith.cmpf oeq, %149, %168 : vector<2x128xf32>
    %170 = arith.select %161, %157, %93 : vector<2x128xi1>, vector<2x128xf32>
    %171 = arith.select %163, %154, %170 : vector<2x128xi1>, vector<2x128xf32>
    %172 = arith.select %165, %154, %171 : vector<2x128xi1>, vector<2x128xf32>
    %173 = arith.select %167, %159, %172 : vector<2x128xi1>, vector<2x128xf32>
    %174 = arith.select %169, %93, %173 : vector<2x128xi1>, vector<2x128xf32>
    %175 = arith.select %161, %93, %159 : vector<2x128xi1>, vector<2x128xf32>
    %176 = arith.select %163, %93, %175 : vector<2x128xi1>, vector<2x128xf32>
    %177 = arith.select %165, %157, %176 : vector<2x128xi1>, vector<2x128xf32>
    %178 = arith.select %167, %154, %177 : vector<2x128xi1>, vector<2x128xf32>
    %179 = arith.select %169, %154, %178 : vector<2x128xi1>, vector<2x128xf32>
    %180 = arith.select %161, %154, %154 : vector<2x128xi1>, vector<2x128xf32>
    %181 = arith.select %163, %159, %180 : vector<2x128xi1>, vector<2x128xf32>
    %182 = arith.select %165, %93, %181 : vector<2x128xi1>, vector<2x128xf32>
    %183 = arith.select %167, %93, %182 : vector<2x128xi1>, vector<2x128xf32>
    %184 = arith.select %169, %157, %183 : vector<2x128xi1>, vector<2x128xf32>
    %c0_48 = arith.constant 0 : index
    %c0_49 = arith.constant 0 : index
    %c0_50 = arith.constant 0 : index
    %c0_51 = arith.constant 0 : index
    %185 = vector.load %arg4[%c0_48, %c0_49, %c0_50, %c0_51] : memref<1x3x2x128xf32, #tpu.memory_space<vmem>>, vector<1x1x2x128xf32>
    %186 = vector.shape_cast %185 : vector<1x1x2x128xf32> to vector<2x128xf32>
    %187 = vector.shape_cast %174 : vector<2x128xf32> to vector<1x1x2x128xf32>
    tpu.vector_store %arg4[%c0_48, %c0_49, %c0_50, %c0_51], %187 {strides = array<i32>} : memref<1x3x2x128xf32, #tpu.memory_space<vmem>>, vector<1x1x2x128xf32>,
    %c0_52 = arith.constant 0 : index
    %c1_53 = arith.constant 1 : index
    %c0_54 = arith.constant 0 : index
    %c0_55 = arith.constant 0 : index
    %188 = vector.load %arg4[%c0_52, %c1_53, %c0_54, %c0_55] : memref<1x3x2x128xf32, #tpu.memory_space<vmem>>, vector<1x1x2x128xf32>
    %189 = vector.shape_cast %188 : vector<1x1x2x128xf32> to vector<2x128xf32>
    %190 = vector.shape_cast %179 : vector<2x128xf32> to vector<1x1x2x128xf32>
    tpu.vector_store %arg4[%c0_52, %c1_53, %c0_54, %c0_55], %190 {strides = array<i32>} : memref<1x3x2x128xf32, #tpu.memory_space<vmem>>, vector<1x1x2x128xf32>,
    %c0_56 = arith.constant 0 : index
    %c2_57 = arith.constant 2 : index
    %c0_58 = arith.constant 0 : index
    %c0_59 = arith.constant 0 : index
    %191 = vector.load %arg4[%c0_56, %c2_57, %c0_58, %c0_59] : memref<1x3x2x128xf32, #tpu.memory_space<vmem>>, vector<1x1x2x128xf32>
    %192 = vector.shape_cast %191 : vector<1x1x2x128xf32> to vector<2x128xf32>
    %193 = vector.shape_cast %184 : vector<2x128xf32> to vector<1x1x2x128xf32>
    tpu.vector_store %arg4[%c0_56, %c2_57, %c0_58, %c0_59], %193 {strides = array<i32>} : memref<1x3x2x128xf32, #tpu.memory_space<vmem>>, vector<1x1x2x128xf32>,
    return
  }
  func.func @transform_0(%arg0: i32, %arg1: i32) -> (i32, i32, i32) {
    %c0_i32 = arith.constant 0 : i32
    %c0_i32_0 = arith.constant 0 : i32
    %c0_i32_1 = arith.constant 0 : i32
    return %arg0, %c0_i32, %c0_i32_0 : i32, i32, i32
  }
  func.func @transform_1(%arg0: i32, %arg1: i32) -> (i32, i32, i32, i32) {
    %c0_i32 = arith.constant 0 : i32
    %c0_i32_0 = arith.constant 0 : i32
    %c0_i32_1 = arith.constant 0 : i32
    return %arg0, %c0_i32, %arg1, %c0_i32_0 : i32, i32, i32, i32
  }
  func.func @transform_2(%arg0: i32, %arg1: i32) -> (i32, i32, i32, i32) {
    %c0_i32 = arith.constant 0 : i32
    %c0_i32_0 = arith.constant 0 : i32
    %c0_i32_1 = arith.constant 0 : i32
    return %arg0, %c0_i32, %arg1, %c0_i32_0 : i32, i32, i32, i32
  }
}

</mosaic_0001>

<llo_original>
// kernel: tpu_custom_call.1
$region0: #{tpu_custom_call.1}
  #allocation0 [shape = 'u32[]', space=smem, size = 0x4, offset = 0x4, fixed_abs, tag = 'smem constant byte address 0x4 - core index']
  #allocation1 [shape = 'u32[144,128]{1,0:T(1,128)}', space=vmem, size = 0x12000, scoped, tag = 'internal scratch']
  %s0 = inlined_call_operand.hbm [shape: f32[2,8,128], index: 0, kind: input, shape index: {}]
  %s1 = inlined_call_operand.hbm [shape: f32[2,3,2,128], index: 1, kind: input, shape index: {}]
  %s2 = inlined_call_operand.hbm [shape: f32[2,3,2,128], index: 2, kind: output, shape index: {}]
  %s3 = sld [smem:[#allocation0]]
  $region49: #{tpu_custom_call.1} parent=0
    _
  %s5 = ssub.s32 1, %s3
  %s6 = scalar_select 0, %s5, %s3
  $region1: #{tpu_custom_call.1} parent=0
    #allocation2 [shape = 'u8[8192]{0}', space=vmem, size = 0x2000, scoped, tag = 'input window, operand 0']
    #allocation3 [shape = 's32[2]{0}', space=sflag, size = 0x8, scoped, tag = 'scoped memory for tpu_custom_call.1']
    #allocation4 [shape = 's32[2]{0}', space=sflag, size = 0x8, scoped, tag = 'scoped memory for tpu_custom_call.1']
    #allocation5 [shape = 'u8[6144]{0}', space=vmem, size = 0x1800, scoped, tag = 'input window, operand 1']
    #allocation6 [shape = 's32[2]{0}', space=sflag, size = 0x8, scoped, tag = 'scoped memory for tpu_custom_call.1']
    #allocation7 [shape = 'u8[6144]{0}', space=vmem, size = 0x1800, scoped, tag = 'output window, operand 0']
    %7 = vsyncpa [#allocation3], 0
    %s8 = scalar_lea.sflag [#allocation3], 1
    %9 = vsyncpa %s8, 0
    %10 = vsyncpa [#allocation6], 0
    %s11 = scalar_lea.sflag [#allocation6], 1
    %12 = vsyncpa %s11, 0
    %13 = vsyncpa [#allocation4], 0
    %s14 = scalar_lea.sflag [#allocation4], 1
    %15 = vsyncpa %s14, 0
    loop: start=0, step=1, limit=4
    $region2: #{tpu_custom_call.1} parent=1 // loop_pre_header
      _
    $region3: #{tpu_custom_call.1} parent=1 // loop_header
      %s17 = sphi 0, %s21
      %p18 = scmp.ge.s32.totalorder %s17, 4
      %s24 = sphi 0, %s36
      %s25 = sphi 0, %s32
      %s26 = sphi 0, %s24
      %s27 = sphi 0, %s25
      %s28 = sphi 0, %s26
      %s29 = sphi 0, %s27
      %s39 = sphi 0, %s41
      %s42 = sphi 0, %s39
      %s43 = sphi 0, %s42
      %s59 = sphi 0, %s43
      %s67 = sphi 0, %s69
      %s70 = sphi 0, %s67
      %s71 = sphi 0, %s70
      %s87 = sphi 0, %s71
      %s95 = sphi 0, %s97
      %s98 = sphi 0, %s95
      %s99 = sphi 0, %s98
      %s115 = sphi 0, %s99
    $region4: #{tpu_custom_call.1} parent=1 // loop_header_branch
      %20 = sbr.rel (%p18) target = $region8
    $region5: #{tpu_custom_call.1} parent=1 // loop_body
      %s22 = ssub.s32 %s17, 1
      %s23 = ssub.s32 %s17, 2
      %s30 = sadd.s32 1, %s25
      %p31 = scmp.ge.s32.totalorder %s30, 1
      %s32 = scalar_select %p31, 0, %s30
      %s33 = sadd.s32 1, %s24
      %s34 = scalar_select %p31, %s33, %s24
      %p35 = scmp.ge.s32.totalorder %s34, 2
      %s36 = scalar_select %p35, 0, %s34
      %s37 = ssub.s32 %s24, %s36
      %p38 = scmp.eq.s32.totalorder %s37, 0
      %s40 = sadd.s32 %s39, 1
      %s41 = scalar_select %p38, %s39, %s40
      %p44 = pneg %p38
      %p45 = scmp.eq.s32.totalorder %s17, 1
      %p46 = por %p44, %p45
      %p47 = scmp.ne.s32.totalorder %s39, %s42
      %p48 = scmp.eq.s32.totalorder %s17, 0
      %p49 = por %p47, %p48
      %p50 = scmp.ne.s32.totalorder %s39, %s42
      %p51 = scmp.eq.s32.totalorder %s22, 1
      %p52 = por %p50, %p51
      %p53 = scmp.ne.s32.totalorder %s42, %s43
      %p54 = scmp.eq.s32.totalorder %s22, 0
      %p55 = por %p53, %p54
      %p56 = scmp.ne.s32.totalorder %s42, %s43
      %p57 = scmp.eq.s32.totalorder %s23, 1
      %p58 = por %p56, %p57
      %p60 = scmp.ne.s32.totalorder %s43, %s59
      %p61 = scmp.eq.s32.totalorder %s23, 0
      %p62 = por %p60, %p61
      %s63 = ssub.s32 %s24, %s36
      %s64 = ssub.s32 %s25, %s32
      %s65 = sor.u32 %s63, %s64
      %p66 = scmp.eq.s32.totalorder %s65, 0
      %s68 = sadd.s32 %s67, 1
      %s69 = scalar_select %p66, %s67, %s68
      %p72 = pneg %p66
      %p73 = scmp.eq.s32.totalorder %s17, 1
      %p74 = por %p72, %p73
      %p75 = scmp.ne.s32.totalorder %s67, %s70
      %p76 = scmp.eq.s32.totalorder %s17, 0
      %p77 = por %p75, %p76
      %p78 = scmp.ne.s32.totalorder %s67, %s70
      %p79 = scmp.eq.s32.totalorder %s22, 1
      %p80 = por %p78, %p79
      %p81 = scmp.ne.s32.totalorder %s70, %s71
      %p82 = scmp.eq.s32.totalorder %s22, 0
      %p83 = por %p81, %p82
      %p84 = scmp.ne.s32.totalorder %s70, %s71
      %p85 = scmp.eq.s32.totalorder %s23, 1
      %p86 = por %p84, %p85
      %p88 = scmp.ne.s32.totalorder %s71, %s87
      %p89 = scmp.eq.s32.totalorder %s23, 0
      %p90 = por %p88, %p89
      %s91 = ssub.s32 %s24, %s36
      %s92 = ssub.s32 %s25, %s32
      %s93 = sor.u32 %s91, %s92
      %p94 = scmp.eq.s32.totalorder %s93, 0
      %s96 = sadd.s32 %s95, 1
      %s97 = scalar_select %p94, %s95, %s96
      %p100 = pneg %p94
      %p101 = scmp.eq.s32.totalorder %s17, 1
      %p102 = por %p100, %p101
      %p103 = scmp.ne.s32.totalorder %s95, %s98
      %p104 = scmp.eq.s32.totalorder %s17, 0
      %p105 = por %p103, %p104
      %p106 = scmp.ne.s32.totalorder %s95, %s98
      %p107 = scmp.eq.s32.totalorder %s22, 1
      %p108 = por %p106, %p107
      %p109 = scmp.ne.s32.totalorder %s98, %s99
      %p110 = scmp.eq.s32.totalorder %s22, 0
      %p111 = por %p109, %p110
      %p112 = scmp.ne.s32.totalorder %s98, %s99
      %p113 = scmp.eq.s32.totalorder %s23, 1
      %p114 = por %p112, %p113
      %p116 = scmp.ne.s32.totalorder %s99, %s115
      %p117 = scmp.eq.s32.totalorder %s23, 0
      %p118 = por %p116, %p117
      %p119 = scmp.le.s32.totalorder 1, %s17
      %p120 = scmp.lt.s32.totalorder %s17, 3
      %p121 = pnand %p119, %p120
      %p122 = pneg %p121
      // Predicated region
      $region9: #{tpu_custom_call.1} parent=5 // pred_check
        _
      $region10: #{tpu_custom_call.1} parent=5 // pred_check_branch
        %124 = sbr.rel (%p121) target = $region12
      $region11: #{tpu_custom_call.1} parent=5 // pred_region
        %s125 = ssub.s32 %s17, 1
      $region12: #{tpu_custom_call.1} parent=5 // pred_fallthru
        _
      %p126 = scmp.lt.s32.totalorder %s17, 2
      // Predicated region
      $region13: #{tpu_custom_call.1} parent=5 // pred_check
        %p127 = pneg %p126
      $region14: #{tpu_custom_call.1} parent=5 // pred_check_branch
        %129 = sbr.rel (%p127) target = $region16
      $region15: #{tpu_custom_call.1} parent=5 // pred_region
        // Predicated region
        $region17: #{tpu_custom_call.1} parent=15 // pred_check
          %p130 = pneg %p49
        $region18: #{tpu_custom_call.1} parent=15 // pred_check_branch
          %132 = sbr.rel (%p130) target = $region20
        $region19: #{tpu_custom_call.1} parent=15 // pred_region
          %s133 = sand.u32 %s39, 1
          %s134 = scalar_lea.sflag [#allocation3], %s133
          %s135 = sand.u32 %s39, 1
          %s136 = smul.addr %s135, 8
          %s137 = scalar_lea.vmem [#allocation2], %s136
          %s139 = ssub.s32 128, 128
          %140 = vsyncadd %s134, %s139
          %s141 = smul.addr %s24, 128
          %s142 = scalar_lea.hbm %s0, %s141
          %s144 = sshll.u32 %s137, 4
          %s145 = int_to_ptr.vmem [resolvable:$true] %s144
          %147 = dma.hbm_to_vmem [thread:$0]  %s142, 128, %s145, %s134
        $region20: #{tpu_custom_call.1} parent=15 // pred_fallthru
          _
        // Predicated region
        $region21: #{tpu_custom_call.1} parent=15 // pred_check
          %p148 = pneg %p77
        $region22: #{tpu_custom_call.1} parent=15 // pred_check_branch
          %150 = sbr.rel (%p148) target = $region24
        $region23: #{tpu_custom_call.1} parent=15 // pred_region
          %s151 = sand.u32 %s67, 1
          %s152 = scalar_lea.sflag [#allocation6], %s151
          %s153 = sand.u32 %s67, 1
          %s154 = smul.addr %s153, 6
          %s155 = scalar_lea.vmem [#allocation5], %s154
          %s157 = ssub.s32 96, 96
          %158 = vsyncadd %s152, %s157
          %s159 = smul.addr %s24, 3
          %s160 = sadd.s32 %s25, %s159
          %s161 = smul.addr %s160, 32
          %s162 = scalar_lea.hbm %s1, %s161
          %s163 = sshll.u32 %s155, 4
          %s164 = int_to_ptr.vmem [resolvable:$true] %s163
          %169 = dma.hbm_to_vmem [thread:$0]  %s162, 96, %s164, %s152, 32, 32, 2
        $region24: #{tpu_custom_call.1} parent=15 // pred_fallthru
          _
      $region16: #{tpu_custom_call.1} parent=5 // pred_fallthru
        _
      %p170 = scmp.le.s32.totalorder 1, %s17
      %p171 = scmp.lt.s32.totalorder %s17, 3
      %p172 = pnand %p170, %p171
      %p173 = pneg %p172
      // Predicated region
      $region25: #{tpu_custom_call.1} parent=5 // pred_check
        _
      $region26: #{tpu_custom_call.1} parent=5 // pred_check_branch
        %175 = sbr.rel (%p172) target = $region28
      $region27: #{tpu_custom_call.1} parent=5 // pred_region
        %s176 = ssub.s32 %s17, 1
        %s177 = sand.u32 %s42, 1
        %s178 = scalar_lea.sflag [#allocation3], %s177
        %s179 = sand.u32 %s42, 1
        %s180 = smul.addr %s179, 8
        %s181 = scalar_lea.vmem [#allocation2], %s180
        // Predicated region
        $region29: #{tpu_custom_call.1} parent=27 // pred_check
          %p182 = pneg %p55
        $region30: #{tpu_custom_call.1} parent=27 // pred_check_branch
          %184 = sbr.rel (%p182) target = $region32
        $region31: #{tpu_custom_call.1} parent=27 // pred_region
          %185 = dma.done %s178, 128
        $region32: #{tpu_custom_call.1} parent=27 // pred_fallthru
          _
        %s186 = sand.u32 %s70, 1
        %s187 = scalar_lea.sflag [#allocation6], %s186
        %s188 = sand.u32 %s70, 1
        %s189 = smul.addr %s188, 6
        %s190 = scalar_lea.vmem [#allocation5], %s189
        // Predicated region
        $region33: #{tpu_custom_call.1} parent=27 // pred_check
          %p191 = pneg %p83
        $region34: #{tpu_custom_call.1} parent=27 // pred_check_branch
          %193 = sbr.rel (%p191) target = $region36
        $region35: #{tpu_custom_call.1} parent=27 // pred_region
          %194 = dma.done %s187, 96
        $region36: #{tpu_custom_call.1} parent=27 // pred_fallthru
          _
        %s195 = sand.u32 %s42, 1
        %s196 = scalar_lea.sflag [#allocation3], %s195
        %s197 = sand.u32 %s42, 1
        %s198 = smul.addr %s197, 8
        %s199 = scalar_lea.vmem [#allocation2], %s198
        %p200 = pneg %p55
        %p201 = pneg %p52
        %s202 = sand.u32 %s70, 1
        %s203 = scalar_lea.sflag [#allocation6], %s202
        %s204 = sand.u32 %s70, 1
        %s205 = smul.addr %s204, 6
        %s206 = scalar_lea.vmem [#allocation5], %s205
        %p207 = pneg %p83
        %p208 = pneg %p80
        %p209 = pneg %p111
        %p210 = pneg %p108
        %s211 = sand.u32 %s98, 1
        %s212 = scalar_lea.sflag [#allocation4], %s211
        %s213 = sand.u32 %s98, 1
        %s214 = smul.addr %s213, 6
        %s215 = scalar_lea.vmem [#allocation7], %s214
        %v216 = vld [vmem:[%s181] sm:$0xff]
        %v217 = vld [vmem:[%s190] sm:$0x3]
        %s218 = scalar_lea.vmem %s190, 2 [#allocation5]
        %v219 = vld [vmem:[%s218] sm:$0x3]
        %s220 = scalar_lea.vmem %s190, 4 [#allocation5]
        %v221 = vld [vmem:[%s220] sm:$0x3]
        %v222 = vmul.f32 %v217, 0.2989
        %v223 = vmul.f32 %v219, 0.587
        %v224 = vadd.f32 %v222, %v223
        %v225 = vmul.f32 %v221, 0.114
        %v226 = vadd.f32 %v224, %v225
        %v227 = vsub.f32 1.0, %v216
        %v228 = vlaneseq
        %v229 = vshrl.u32 %v228, 7
        %v230 = vsub.s32 2, %v229
        %v231 = vrot.slane %v216, %v230
        %v232 = vmul.f32 %v231, %v217
        %v233 = vlaneseq
        %v234 = vshrl.u32 %v233, 7
        %v235 = vsub.s32 2, %v234
        %v236 = vrot.slane %v227, %v235
        %v237 = vmul.f32 %v236, %v226
        %v238 = vadd.f32 %v232, %v237
        %v239 = vmax.f32 %v238, 0.0
        %v240 = vmin.f32 %v239, 1.0
        %v241 = vmul.f32 %v231, %v219
        %v242 = vadd.f32 %v241, %v237
        %v243 = vmax.f32 %v242, 0.0
        %v244 = vmin.f32 %v243, 1.0
        %v245 = vmul.f32 %v231, %v221
        %v246 = vadd.f32 %v245, %v237
        %v247 = vmax.f32 %v246, 0.0
        %v248 = vmin.f32 %v247, 1.0
        %v249 = vlaneseq
        %v250 = vshrl.u32 %v249, 7
        %v251 = vsub.s32 0, %v250
        %v252 = vrot.slane %v216, %v251
        %v253 = vmul.f32 %v240, %v252
        %v254 = vmax.f32 %v253, 0.0
        %v255 = vmin.f32 %v254, 1.0
        %v256 = vmul.f32 %v244, %v252
        %v257 = vmax.f32 %v256, 0.0
        %v258 = vmin.f32 %v257, 1.0
        %v259 = vmul.f32 %v248, %v252
        %v260 = vmax.f32 %v259, 0.0
        %v261 = vmin.f32 %v260, 1.0
        %v262 = vlaneseq
        %v263 = vshrl.u32 %v262, 7
        %v264 = vsub.s32 1, %v263
        %v265 = vrot.slane %v216, %v264
        %v266 = vmul.f32 %v265, %v255
        %v267 = vlaneseq
        %v268 = vshrl.u32 %v267, 7
        %v269 = vsub.s32 4, %v268
        %v270 = vrot.slane %v216, %v269
        %v271 = vadd.f32 %v266, %v270
        %v272 = vmax.f32 %v271, 0.0
        %v273 = vmin.f32 %v272, 1.0
        %v274 = vmul.f32 %v265, %v258
        %v275 = vadd.f32 %v274, %v270
        %v276 = vmax.f32 %v275, 0.0
        %v277 = vmin.f32 %v276, 1.0
        %v278 = vmul.f32 %v265, %v261
        %v279 = vadd.f32 %v278, %v270
        %v280 = vmax.f32 %v279, 0.0
        %v281 = vmin.f32 %v280, 1.0
        %v282 = vmax.f32 %v273, %v277
        %v283 = vmax.f32 %v282, %v281
        %v284 = vmin.f32 %v273, %v277
        %v285 = vmin.f32 %v284, %v281
        %vm286 = vcmp.eq.f32.partialorder %v283, %v285
        %v287 = vsub.f32 %v283, %v285
        %v288 = vsel %vm286, 1.0, %v283
        %v289 = vrcp.pop %v288
        %v290 = vmul.f32 1.0, %v289
        %v291 = vmul.f32 %v287, %v290
        %v292 = vsel %vm286, 1.0, %v287
        %v293 = vrcp.pop %v292
        %v294 = vmul.f32 1.0, %v293
        %v295 = vsub.f32 %v283, %v273
        %v296 = vmul.f32 %v295, %v294
        %v297 = vsub.f32 %v283, %v277
        %v298 = vmul.f32 %v297, %v294
        %v299 = vsub.f32 %v283, %v281
        %v300 = vmul.f32 %v299, %v294
        %vm301 = vcmp.eq.f32.partialorder %v283, %v273
        %v302 = vsel %vm301, 1, 0
        %v303 = vcvt.s32.f32 %v302
        %v304 = vsub.f32 %v300, %v298
        %v305 = vmul.f32 %v303, %v304
        %vm306 = vcmp.eq.f32.partialorder %v283, %v277
        %vm307 = vcmp.ne.f32.partialorder %v283, %v273
        %vm308 = vmand %vm306, %vm307
        %v309 = vsel %vm308, 1, 0
        %v310 = vcvt.s32.f32 %v309
        %v311 = vadd.f32 %v296, 2.0
        %v312 = vsub.f32 %v311, %v300
        %v313 = vmul.f32 %v310, %v312
        %vm314 = vcmp.ne.f32.partialorder %v283, %v277
        %vm315 = vmand %vm314, %vm307
        %v316 = vsel %vm315, 1, 0
        %v317 = vcvt.s32.f32 %v316
        %v318 = vadd.f32 %v298, 4.0
        %v319 = vsub.f32 %v318, %v296
        %v320 = vmul.f32 %v317, %v319
        %v321 = vadd.f32 %v305, %v313
        %v322 = vadd.f32 %v321, %v320
        %v323 = vrcp.pop 6.0
        %v324 = vmul.f32 %v322, %v323
        %v325 = vadd.f32 %v324, 1.0
        %v326 = vfloor.f32 %v325
        %v327 = vsub.f32 %v325, %v326
        %v328 = vlaneseq
        %v329 = vshrl.u32 %v328, 7
        %v330 = vsub.s32 3, %v329
        %v331 = vrot.slane %v216, %v330
        %v332 = vadd.f32 %v327, %v331
        %v333 = vfloor.f32 %v332
        %v334 = vsub.f32 %v332, %v333
        %v335 = vmul.f32 %v334, 6.0
        %v336 = vfloor.f32 %v335
        %v337 = vsub.f32 %v335, %v336
        %v338 = vsub.f32 1.0, %v291
        %v339 = vmul.f32 %v291, %v337
        %v340 = vmul.f32 %v338, %v283
        %v341 = vsub.f32 1.0, %v339
        %v342 = vmul.f32 %v341, %v283
        %v343 = vadd.f32 %v339, %v338
        %v344 = vmul.f32 %v343, %v283
        %vm345 = vcmp.eq.f32.partialorder %v336, 1.0
        %vm346 = vcmp.eq.f32.partialorder %v336, 2.0
        %vm347 = vcmp.eq.f32.partialorder %v336, 3.0
        %vm348 = vcmp.eq.f32.partialorder %v336, 4.0
        %vm349 = vcmp.eq.f32.partialorder %v336, 5.0
        %v350 = vsel %vm345, %v342, %v283
        %v351 = vsel %vm346, %v340, %v350
        %v352 = vsel %vm347, %v340, %v351
        %v353 = vsel %vm348, %v344, %v352
        %v354 = vsel %vm349, %v283, %v353
        %v355 = vsel %vm345, %v283, %v344
        %v356 = vsel %vm346, %v283, %v355
        %v357 = vsel %vm347, %v342, %v356
        %v358 = vsel %vm348, %v340, %v357
        %v359 = vsel %vm349, %v340, %v358
        %v360 = vsel %vm346, %v344, %v340
        %v361 = vsel %vm347, %v283, %v360
        %v362 = vsel %vm348, %v283, %v361
        %v363 = vsel %vm349, %v342, %v362
        %364 = vst [vmem:[%s215] sm:$0x3] %v354
        %s365 = scalar_lea.vmem %s215, 2 [#allocation7]
        %366 = vst [vmem:[%s365] sm:$0x3] %v359
        %s367 = scalar_lea.vmem %s215, 4 [#allocation7]
        %368 = vst [vmem:[%s367] sm:$0x3] %v363
        %s369 = sand.u32 %s98, 1
        %s370 = scalar_lea.sflag [#allocation4], %s369
        %s371 = sand.u32 %s98, 1
        %s372 = smul.addr %s371, 6
        %s373 = scalar_lea.vmem [#allocation7], %s372
        // Predicated region
        $region37: #{tpu_custom_call.1} parent=27 // pred_check
          %p374 = pneg %p108
        $region38: #{tpu_custom_call.1} parent=27 // pred_check_branch
          %376 = sbr.rel (%p374) target = $region40
        $region39: #{tpu_custom_call.1} parent=27 // pred_region
          %s378 = ssub.s32 96, 96
          %379 = vsyncadd %s370, %s378
          %s380 = smul.addr %s26, 3
          %s381 = sadd.s32 %s27, %s380
          %s382 = smul.addr %s381, 32
          %s383 = scalar_lea.hbm %s2, %s382
          %s384 = sshll.u32 %s373, 4
          %s385 = int_to_ptr.vmem [resolvable:$true] %s384
          %390 = dma.vmem_to_hbm [thread:$0]  %s385, 96, %s383, %s370, 32, 32, 2
        $region40: #{tpu_custom_call.1} parent=27 // pred_fallthru
          _
      $region28: #{tpu_custom_call.1} parent=5 // pred_fallthru
        _
      %p391 = scmp.le.s32.totalorder 2, %s17
      // Predicated region
      $region41: #{tpu_custom_call.1} parent=5 // pred_check
        %p392 = pneg %p391
      $region42: #{tpu_custom_call.1} parent=5 // pred_check_branch
        %394 = sbr.rel (%p392) target = $region44
      $region43: #{tpu_custom_call.1} parent=5 // pred_region
        %s395 = ssub.s32 %s17, 2
        // Predicated region
        $region45: #{tpu_custom_call.1} parent=43 // pred_check
          %p396 = pneg %p114
        $region46: #{tpu_custom_call.1} parent=43 // pred_check_branch
          %398 = sbr.rel (%p396) target = $region48
        $region47: #{tpu_custom_call.1} parent=43 // pred_region
          %s399 = sand.u32 %s99, 1
          %s400 = scalar_lea.sflag [#allocation4], %s399
          %s401 = sand.u32 %s99, 1
          %s402 = smul.addr %s401, 6
          %s403 = scalar_lea.vmem [#allocation7], %s402
          %404 = dma.done %s400, 96
        $region48: #{tpu_custom_call.1} parent=43 // pred_fallthru
          _
      $region44: #{tpu_custom_call.1} parent=5 // pred_fallthru
        _
    $region6: #{tpu_custom_call.1} parent=1 // loop_footer
      %s21 = sadd.s32 1, %s17
    $region7: #{tpu_custom_call.1} parent=1 // loop_footer_branch
      %16 = sbr.rel target = $region3
    $region8: #{tpu_custom_call.1} parent=1 // loop_exit
      _
    %405 = vsyncpa [#allocation3], 1
    %s406 = scalar_lea.sflag [#allocation3], 1
    %407 = vsyncpa %s406, 1
    %408 = vsyncpa [#allocation6], 1
    %s409 = scalar_lea.sflag [#allocation6], 1
    %410 = vsyncpa %s409, 1
    %411 = vsyncpa [#allocation4], 1
    %s412 = scalar_lea.sflag [#allocation4], 1
    %413 = vsyncpa %s412, 1

</llo_original>
